<compile_context>
chip_gen: v6e
topology: v6e:2x2x1
jax: 0.10.0
libtpu: 0.0.40
codegen_flags: <defaults>
</compile_context>

<pallas_src>
import numpy as np
import jax
import jax.numpy as jnp
from jax import lax
from jax.experimental import pallas as pl
from jax.experimental.pallas import tpu as pltpu


def position_encoding_init(n_position, emb_dim):
    """Sinusoidal position encoding table, as a host-side numpy float32 array."""
    pe = np.array(
        [
            [pos / np.power(10000, 2 * (j // 2) / emb_dim) for j in range(emb_dim)]
            if pos != 0
            else np.zeros(emb_dim)
            for pos in range(n_position)
        ]
    )
    pe[1:, 0::2] = np.sin(pe[1:, 0::2])
    pe[1:, 1::2] = np.cos(pe[1:, 1::2])
    return pe.astype(np.float32)


def hop_kernel(mem_ref, q_ref, emb_a_ref, emb_c_ref, pe_ref, w_ref, b_ref, out_ref):
    # Shapes (full arrays, single kernel invocation):
    #   mem_ref   : (B, N, L) int32   sentence token ids
    #   q_ref     : (B, Q, D) f32     query embeddings (u)
    #   emb_a_ref : (V, D)    f32     embedding table A
    #   emb_c_ref : (V, D)    f32     embedding table C
    #   pe_ref    : (1, D)    f32     sum_L position_encoding(L, D)
    #   w_ref     : (D, D)    f32     nn.Linear weight (out, in)
    #   b_ref     : (1, D)    f32     nn.Linear bias
    #   out_ref   : (B*Q, D)  f32     flattened LayerNorm output
    B, Q, D = q_ref.shape
    _, N, L = mem_ref.shape
    V = emb_a_ref.shape[0]
    inv_sqrt_d = jnp.float32(1.0 / np.sqrt(D))

    idx = mem_ref[...]                                   # (B, N, L) int32
    idx2 = idx.reshape(B * N, L)                         # leading-dim merge (layout preserving)

    # ---- Fused Memory module: sum_L emb[idx] + sum_L pe via token-count matmul (MXU) ----
    # counts[bn, v] = #occurrences of token v in sentence bn; then counts @ table
    # reproduces the gather + word-sum exactly (counts are small exact ints).
    lane_v = lax.broadcasted_iota(jnp.int32, (B * N, V), 1)
    counts = jnp.zeros((B * N, V), jnp.float32)
    for l in range(L):                                   # L is small & static -> unrolled VPU compares
        counts = counts + (idx2[:, l:l + 1] == lane_v).astype(jnp.float32)

    pe_sum = pe_ref[...]                                 # (1, D)
    m = (jnp.dot(counts, emb_a_ref[...], preferred_element_type=jnp.float32)
         + pe_sum).reshape(B, N, D)
    c = (jnp.dot(counts, emb_c_ref[...], preferred_element_type=jnp.float32)
         + pe_sum).reshape(B, N, D)

    # ---- Mask: sum_L token ids, produced directly in (B, 1, N) lane layout ----
    ones_row = jnp.ones((B, 1, L), jnp.float32)
    msum = jnp.einsum("bol,bnl->bon", ones_row, idx.astype(jnp.float32),
                      preferred_element_type=jnp.float32)          # (B, 1, N)

    # ---- MQAttention: scores, masked_fill, softmax over the QUERY axis, context mix ----
    u = q_ref[...]                                       # (B, Q, D)
    scores = jnp.einsum("bqd,bnd->bqn", u, m,
                        preferred_element_type=jnp.float32) * inv_sqrt_d
    scores = jnp.where(msum == 0.0, jnp.float32(-1.0e9), scores)   # exact masked_fill semantics
    smax = jnp.max(scores, axis=1, keepdims=True)                  # softmax over dim=-2 (queries)
    e = jnp.exp(scores - smax)
    p = e * pl.reciprocal(jnp.sum(e, axis=1, keepdims=True), approx=False)
    o = jnp.einsum("bqn,bnd->bqd", p, c, preferred_element_type=jnp.float32)

    # ---- Residual + shared Linear on the flattened (B*Q, D) view, then LayerNorm ----
    x = (o + u).reshape(B * Q, D)                        # one MXU call instead of B batched ones
    x = lax.dot_general(x, w_ref[...], (((1,), (1,)), ((), ())),
                        preferred_element_type=jnp.float32) + b_ref[...]
    mean = jnp.mean(x, axis=-1, keepdims=True)
    var = jnp.sum((x - mean) ** 2, axis=-1, keepdims=True) * jnp.float32(1.0 / (D - 1))
    # LayerNorm variant of the reference: a=1, b=0, UNBIASED std, eps added OUTSIDE.
    out_ref[...] = (x - mean) * lax.rsqrt(var) + jnp.float32(1e-5)


def hop_forward(memory, query_embed, emb_A, emb_C, W, bias):
    B, N, L = memory.shape
    Q, D = query_embed.shape[1], query_embed.shape[2]

    # Host-side constant prep only (no data-dependent XLA glue left):
    pe_sum = jnp.asarray(
        position_encoding_init(L, D).sum(axis=0, dtype=np.float32).reshape(1, D)
    )
    bias2 = bias.reshape(1, D)

    vmem_spec = lambda: pl.BlockSpec(memory_space=pltpu.MemorySpace.VMEM)
    out_flat = pl.pallas_call(
        hop_kernel,
        out_shape=jax.ShapeDtypeStruct((B * Q, D), jnp.float32),
        in_specs=[vmem_spec() for _ in range(7)],
        out_specs=vmem_spec(),
    )(memory.astype(jnp.int32), query_embed, emb_A, emb_C, pe_sum, W, bias2)

    return out_flat.reshape(B, Q, D)


def hop_reference(memory, query_embed, emb_A, emb_C, W, bias):
    """Pure-JAX reference mirroring the PyTorch forward."""
    B, N, L = memory.shape
    D = query_embed.shape[-1]
    pe = jnp.asarray(position_encoding_init(L, D))
    m = jnp.sum(emb_A[memory] + pe, axis=-2)          # (B, N, D)
    c = jnp.sum(emb_C[memory] + pe, axis=-2)          # (B, N, D)
    mask = jnp.sum(memory, axis=-1)                   # (B, N)
    scores = jnp.einsum("bqd,bnd->bqn", query_embed, m) / np.sqrt(D)
    scores = jnp.where(mask[:, None, :] == 0, -1.0e9, scores)
    p = jax.nn.softmax(scores, axis=-2)               # softmax over the query axis
    o = jnp.einsum("bqn,bnd->bqd", p, c)
    x = jnp.einsum("bqd,od->bqo", o + query_embed, W) + bias
    mean = jnp.mean(x, axis=-1, keepdims=True)
    std = jnp.sqrt(jnp.sum((x - mean) ** 2, axis=-1, keepdims=True) / (D - 1))
    return (x - mean) / std + 1e-5


if __name__ == "__main__":
    key = jax.random.PRNGKey(0)
    k1, k2, k3, k4, k5, k6 = jax.random.split(key, 6)

    vocab_size, D = 50, 32
    B, N, L, Q = 2, 8, 8, 8   # Q=8 keeps the (B, Q, D) -> (B*Q, D) flatten sublane-aligned

    memory = jax.random.randint(k1, (B, N, L), 0, vocab_size, dtype=jnp.int32)
    query_embed = jax.random.normal(k2, (B, Q, D), dtype=jnp.float32)

    # Deterministic synthetic parameters (nn.Embedding ~ N(0,1); Linear small).
    emb_A = jax.random.normal(k3, (vocab_size, D), dtype=jnp.float32)
    emb_C = jax.random.normal(k4, (vocab_size, D), dtype=jnp.float32)
    W = jax.random.normal(k5, (D, D), dtype=jnp.float32) * 0.1
    bias = jax.random.normal(k6, (D,), dtype=jnp.float32) * 0.1

    out = hop_forward(memory, query_embed, emb_A, emb_C, W, bias)
    out = jax.block_until_ready(out)

    ref = hop_reference(memory, query_embed, emb_A, emb_C, W, bias)
    np.testing.assert_allclose(np.asarray(out), np.asarray(ref), atol=1e-4, rtol=1e-4)

    print("KERNEL_OK")
</pallas_src>

<mosaic_0001>
module attributes {stable_mosaic.version = 11 : i64} {
  func.func @hop_kernel(%arg0: memref<2x8x8xi32, #tpu.memory_space<vmem>>, %arg1: memref<2x8x32xf32, #tpu.memory_space<vmem>>, %arg2: memref<50x32xf32, #tpu.memory_space<vmem>>, %arg3: memref<50x32xf32, #tpu.memory_space<vmem>>, %arg4: memref<1x32xf32, #tpu.memory_space<vmem>>, %arg5: memref<32x32xf32, #tpu.memory_space<vmem>>, %arg6: memref<1x32xf32, #tpu.memory_space<vmem>>, %arg7: memref<16x32xf32, #tpu.memory_space<vmem>>) attributes {dimension_semantics = [], scalar_prefetch = 0 : i64, scratch_operands = 0 : i64, tpu.core_type = #tpu.core_type<tc>} {
    %c0 = arith.constant 0 : index
    %c0_0 = arith.constant 0 : index
    %c0_1 = arith.constant 0 : index
    %0 = vector.load %arg0[%c0, %c0_0, %c0_1] : memref<2x8x8xi32, #tpu.memory_space<vmem>>, vector<2x8x8xi32>
    %1 = vector.shape_cast %0 : vector<2x8x8xi32> to vector<16x8xi32>
    %2 = tpu.iota {dimensions = array<i32: 1>} : vector<16x50xi32>
    %cst = arith.constant 0.000000e+00 : f32
    %3 = vector.broadcast %cst : f32 to vector<16x50xf32>
    %4 = vector.extract_strided_slice %1 {offsets = [0, 0], sizes = [16, 1], strides = [1, 1]} : vector<16x8xi32> to vector<16x1xi32>
    %5 = vector.broadcast %4 : vector<16x1xi32> to vector<16x50xi32>
    %6 = arith.cmpi eq, %5, %2 : vector<16x50xi32>
    %7 = arith.extui %6 : vector<16x50xi1> to vector<16x50xi32>
    %8 = arith.sitofp %7 : vector<16x50xi32> to vector<16x50xf32>
    %9 = arith.addf %3, %8 : vector<16x50xf32>
    %10 = vector.extract_strided_slice %1 {offsets = [0, 1], sizes = [16, 1], strides = [1, 1]} : vector<16x8xi32> to vector<16x1xi32>
    %11 = vector.broadcast %10 : vector<16x1xi32> to vector<16x50xi32>
    %12 = arith.cmpi eq, %11, %2 : vector<16x50xi32>
    %13 = arith.extui %12 : vector<16x50xi1> to vector<16x50xi32>
    %14 = arith.sitofp %13 : vector<16x50xi32> to vector<16x50xf32>
    %15 = arith.addf %9, %14 : vector<16x50xf32>
    %16 = vector.extract_strided_slice %1 {offsets = [0, 2], sizes = [16, 1], strides = [1, 1]} : vector<16x8xi32> to vector<16x1xi32>
    %17 = vector.broadcast %16 : vector<16x1xi32> to vector<16x50xi32>
    %18 = arith.cmpi eq, %17, %2 : vector<16x50xi32>
    %19 = arith.extui %18 : vector<16x50xi1> to vector<16x50xi32>
    %20 = arith.sitofp %19 : vector<16x50xi32> to vector<16x50xf32>
    %21 = arith.addf %15, %20 : vector<16x50xf32>
    %22 = vector.extract_strided_slice %1 {offsets = [0, 3], sizes = [16, 1], strides = [1, 1]} : vector<16x8xi32> to vector<16x1xi32>
    %23 = vector.broadcast %22 : vector<16x1xi32> to vector<16x50xi32>
    %24 = arith.cmpi eq, %23, %2 : vector<16x50xi32>
    %25 = arith.extui %24 : vector<16x50xi1> to vector<16x50xi32>
    %26 = arith.sitofp %25 : vector<16x50xi32> to vector<16x50xf32>
    %27 = arith.addf %21, %26 : vector<16x50xf32>
    %28 = vector.extract_strided_slice %1 {offsets = [0, 4], sizes = [16, 1], strides = [1, 1]} : vector<16x8xi32> to vector<16x1xi32>
    %29 = vector.broadcast %28 : vector<16x1xi32> to vector<16x50xi32>
    %30 = arith.cmpi eq, %29, %2 : vector<16x50xi32>
    %31 = arith.extui %30 : vector<16x50xi1> to vector<16x50xi32>
    %32 = arith.sitofp %31 : vector<16x50xi32> to vector<16x50xf32>
    %33 = arith.addf %27, %32 : vector<16x50xf32>
    %34 = vector.extract_strided_slice %1 {offsets = [0, 5], sizes = [16, 1], strides = [1, 1]} : vector<16x8xi32> to vector<16x1xi32>
    %35 = vector.broadcast %34 : vector<16x1xi32> to vector<16x50xi32>
    %36 = arith.cmpi eq, %35, %2 : vector<16x50xi32>
    %37 = arith.extui %36 : vector<16x50xi1> to vector<16x50xi32>
    %38 = arith.sitofp %37 : vector<16x50xi32> to vector<16x50xf32>
    %39 = arith.addf %33, %38 : vector<16x50xf32>
    %40 = vector.extract_strided_slice %1 {offsets = [0, 6], sizes = [16, 1], strides = [1, 1]} : vector<16x8xi32> to vector<16x1xi32>
    %41 = vector.broadcast %40 : vector<16x1xi32> to vector<16x50xi32>
    %42 = arith.cmpi eq, %41, %2 : vector<16x50xi32>
    %43 = arith.extui %42 : vector<16x50xi1> to vector<16x50xi32>
    %44 = arith.sitofp %43 : vector<16x50xi32> to vector<16x50xf32>
    %45 = arith.addf %39, %44 : vector<16x50xf32>
    %46 = vector.extract_strided_slice %1 {offsets = [0, 7], sizes = [16, 1], strides = [1, 1]} : vector<16x8xi32> to vector<16x1xi32>
    %47 = vector.broadcast %46 : vector<16x1xi32> to vector<16x50xi32>
    %48 = arith.cmpi eq, %47, %2 : vector<16x50xi32>
    %49 = arith.extui %48 : vector<16x50xi1> to vector<16x50xi32>
    %50 = arith.sitofp %49 : vector<16x50xi32> to vector<16x50xf32>
    %51 = arith.addf %45, %50 : vector<16x50xf32>
    %c0_2 = arith.constant 0 : index
    %c0_3 = arith.constant 0 : index
    %52 = vector.load %arg4[%c0_2, %c0_3] : memref<1x32xf32, #tpu.memory_space<vmem>>, vector<1x32xf32>
    %c0_4 = arith.constant 0 : index
    %c0_5 = arith.constant 0 : index
    %53 = vector.load %arg2[%c0_4, %c0_5] : memref<50x32xf32, #tpu.memory_space<vmem>>, vector<50x32xf32>
    %cst_6 = arith.constant dense<0.000000e+00> : vector<16x32xf32>
    %54 = tpu.matmul %51, %53, %cst_6 {dimension_numbers = #tpu.dot_dimension_numbers<[1], [0], [0], [1], [0, 0, 1, 1], [], []>} : vector<16x50xf32>, vector<50x32xf32>, vector<16x32xf32> -> vector<16x32xf32>
    %55 = vector.broadcast %52 : vector<1x32xf32> to vector<16x32xf32>
    %56 = arith.addf %54, %55 : vector<16x32xf32>
    %57 = vector.shape_cast %56 : vector<16x32xf32> to vector<2x8x32xf32>
    %c0_7 = arith.constant 0 : index
    %c0_8 = arith.constant 0 : index
    %58 = vector.load %arg3[%c0_7, %c0_8] : memref<50x32xf32, #tpu.memory_space<vmem>>, vector<50x32xf32>
    %cst_9 = arith.constant dense<0.000000e+00> : vector<16x32xf32>
    %59 = tpu.matmul %51, %58, %cst_9 {dimension_numbers = #tpu.dot_dimension_numbers<[1], [0], [0], [1], [0, 0, 1, 1], [], []>} : vector<16x50xf32>, vector<50x32xf32>, vector<16x32xf32> -> vector<16x32xf32>
    %60 = vector.broadcast %52 : vector<1x32xf32> to vector<16x32xf32>
    %61 = arith.addf %59, %60 : vector<16x32xf32>
    %62 = vector.shape_cast %61 : vector<16x32xf32> to vector<2x8x32xf32>
    %cst_10 = arith.constant 1.000000e+00 : f32
    %63 = vector.broadcast %cst_10 : f32 to vector<2x1x8xf32>
    %64 = arith.sitofp %0 : vector<2x8x8xi32> to vector<2x8x8xf32>
    "tpu.trace_start"() <{level = 10 : i32, message = "bol,bnl->bon"}> : () -> ()
    %cst_11 = arith.constant dense<0.000000e+00> : vector<2x1x8xf32>
    %65 = tpu.matmul %63, %64, %cst_11 {dimension_numbers = #tpu.dot_dimension_numbers<[2], [2], [1], [1], [0, 0, 0, 1, 1, 1], [0], [0]>} : vector<2x1x8xf32>, vector<2x8x8xf32>, vector<2x1x8xf32> -> vector<2x1x8xf32>
    "tpu.trace_stop"() : () -> ()
    %c0_12 = arith.constant 0 : index
    %c0_13 = arith.constant 0 : index
    %c0_14 = arith.constant 0 : index
    %66 = vector.load %arg1[%c0_12, %c0_13, %c0_14] : memref<2x8x32xf32, #tpu.memory_space<vmem>>, vector<2x8x32xf32>
    "tpu.trace_start"() <{level = 10 : i32, message = "bqd,bnd->bqn"}> : () -> ()
    %cst_15 = arith.constant dense<0.000000e+00> : vector<2x8x8xf32>
    %67 = tpu.matmul %66, %57, %cst_15 {dimension_numbers = #tpu.dot_dimension_numbers<[2], [2], [1], [1], [0, 0, 0, 1, 1, 1], [0], [0]>} : vector<2x8x32xf32>, vector<2x8x32xf32>, vector<2x8x8xf32> -> vector<2x8x8xf32>
    "tpu.trace_stop"() : () -> ()
    %cst_16 = arith.constant 0.176776692 : f32
    %68 = vector.broadcast %cst_16 : f32 to vector<2x8x8xf32>
    %69 = arith.mulf %67, %68 : vector<2x8x8xf32>
    %cst_17 = arith.constant 0.000000e+00 : f32
    %70 = vector.broadcast %cst_17 : f32 to vector<2x1x8xf32>
    %71 = arith.cmpf oeq, %65, %70 : vector<2x1x8xf32>
    %cst_18 = arith.constant -1.000000e+09 : f32
    %72 = vector.shape_cast %71 : vector<2x1x8xi1> to vector<2x1x8xi1>
    %73 = vector.broadcast %72 : vector<2x1x8xi1> to vector<2x8x8xi1>
    %74 = vector.broadcast %cst_18 : f32 to vector<2x8x8xf32>
    %75 = arith.select %73, %74, %69 : vector<2x8x8xi1>, vector<2x8x8xf32>
    %cst_19 = arith.constant dense<0xFF800000> : vector<2x8xf32>
    %76 = vector.multi_reduction <maximumf>, %75, %cst_19 [1] : vector<2x8x8xf32> to vector<2x8xf32>
    %77 = vector.shape_cast %76 : vector<2x8xf32> to vector<2x1x8xf32>
    %78 = vector.broadcast %77 : vector<2x1x8xf32> to vector<2x8x8xf32>
    %79 = arith.subf %75, %78 : vector<2x8x8xf32>
    %80 = math.exp %79 : vector<2x8x8xf32>
    %cst_20 = arith.constant dense<0.000000e+00> : vector<2x8xf32>
    %81 = vector.multi_reduction <add>, %80, %cst_20 [1] : vector<2x8x8xf32> to vector<2x8xf32>
    %82 = vector.shape_cast %81 : vector<2x8xf32> to vector<2x1x8xf32>
    %83 = tpu.reciprocal %82 : vector<2x1x8xf32> -> vector<2x1x8xf32>
    %84 = vector.broadcast %83 : vector<2x1x8xf32> to vector<2x8x8xf32>
    %85 = arith.mulf %80, %84 : vector<2x8x8xf32>
    "tpu.trace_start"() <{level = 10 : i32, message = "bqn,bnd->bqd"}> : () -> ()
    %cst_21 = arith.constant dense<0.000000e+00> : vector<2x8x32xf32>
    %86 = tpu.matmul %85, %62, %cst_21 {dimension_numbers = #tpu.dot_dimension_numbers<[2], [1], [1], [2], [0, 0, 0, 1, 1, 2], [0], [0]>} : vector<2x8x8xf32>, vector<2x8x32xf32>, vector<2x8x32xf32> -> vector<2x8x32xf32>
    "tpu.trace_stop"() : () -> ()
    %87 = arith.addf %86, %66 : vector<2x8x32xf32>
    %88 = vector.shape_cast %87 : vector<2x8x32xf32> to vector<16x32xf32>
    %c0_22 = arith.constant 0 : index
    %c0_23 = arith.constant 0 : index
    %89 = vector.load %arg5[%c0_22, %c0_23] : memref<32x32xf32, #tpu.memory_space<vmem>>, vector<32x32xf32>
    %cst_24 = arith.constant dense<0.000000e+00> : vector<16x32xf32>
    %90 = tpu.matmul %88, %89, %cst_24 {dimension_numbers = #tpu.dot_dimension_numbers<[1], [1], [0], [0], [0, 0, 1, 0], [], []>} : vector<16x32xf32>, vector<32x32xf32>, vector<16x32xf32> -> vector<16x32xf32>
    %c0_25 = arith.constant 0 : index
    %c0_26 = arith.constant 0 : index
    %91 = vector.load %arg6[%c0_25, %c0_26] : memref<1x32xf32, #tpu.memory_space<vmem>>, vector<1x32xf32>
    %92 = vector.broadcast %91 : vector<1x32xf32> to vector<16x32xf32>
    %93 = arith.addf %90, %92 : vector<16x32xf32>
    %cst_27 = arith.constant dense<0.000000e+00> : vector<16xf32>
    %94 = vector.multi_reduction <add>, %93, %cst_27 [1] : vector<16x32xf32> to vector<16xf32>
    %95 = vector.shape_cast %94 : vector<16xf32> to vector<16x1xf32>
    %cst_28 = arith.constant 3.200000e+01 : f32
    %96 = vector.broadcast %cst_28 : f32 to vector<16x1xf32>
    %97 = arith.divf %95, %96 : vector<16x1xf32>
    %98 = vector.broadcast %97 : vector<16x1xf32> to vector<16x32xf32>
    %99 = arith.subf %93, %98 : vector<16x32xf32>
    %100 = arith.mulf %99, %99 : vector<16x32xf32>
    %cst_29 = arith.constant dense<0.000000e+00> : vector<16xf32>
    %101 = vector.multi_reduction <add>, %100, %cst_29 [1] : vector<16x32xf32> to vector<16xf32>
    %102 = vector.shape_cast %101 : vector<16xf32> to vector<16x1xf32>
    %cst_30 = arith.constant 0.0322580636 : f32
    %103 = vector.broadcast %cst_30 : f32 to vector<16x1xf32>
    %104 = arith.mulf %102, %103 : vector<16x1xf32>
    %105 = vector.broadcast %97 : vector<16x1xf32> to vector<16x32xf32>
    %106 = arith.subf %93, %105 : vector<16x32xf32>
    %107 = math.rsqrt %104 : vector<16x1xf32>
    %108 = vector.broadcast %107 : vector<16x1xf32> to vector<16x32xf32>
    %109 = arith.mulf %106, %108 : vector<16x32xf32>
    %cst_31 = arith.constant 9.99999974E-6 : f32
    %110 = vector.broadcast %cst_31 : f32 to vector<16x32xf32>
    %111 = arith.addf %109, %110 : vector<16x32xf32>
    %c0_32 = arith.constant 0 : index
    %c0_33 = arith.constant 0 : index
    %112 = vector.load %arg7[%c0_32, %c0_33] : memref<16x32xf32, #tpu.memory_space<vmem>>, vector<16x32xf32>
    tpu.vector_store %arg7[%c0_32, %c0_33], %111 {strides = array<i32>} : memref<16x32xf32, #tpu.memory_space<vmem>>, vector<16x32xf32>,
    return
  }
}

</mosaic_0001>

<llo_original>
// kernel: tpu_custom_call.1
$region0: #{tpu_custom_call.1}
  #allocation0 [shape = 'u32[]', space=smem, size = 0x4, offset = 0x4, fixed_abs, tag = 'smem constant byte address 0x4 - core index']
  #allocation1 [shape = 'u32[144,128]{1,0:T(1,128)}', space=vmem, size = 0x12000, scoped, tag = 'internal scratch']
  %s0 = inlined_call_operand.vmem [shape: s32[2,8,8], index: 0, kind: input, shape index: {}]
  %s1 = inlined_call_operand.vmem [shape: f32[2,8,32], index: 1, kind: input, shape index: {}]
  %s2 = inlined_call_operand.vmem [shape: f32[50,32], index: 2, kind: input, shape index: {}]
  %s3 = inlined_call_operand.vmem [shape: f32[50,32], index: 3, kind: input, shape index: {}]
  %s4 = inlined_call_operand.vmem [shape: f32[1,32], index: 4, kind: input, shape index: {}]
  %s5 = inlined_call_operand.vmem [shape: f32[32,32], index: 5, kind: input, shape index: {}]
  %s6 = inlined_call_operand.vmem [shape: f32[1,32], index: 6, kind: input, shape index: {}]
  %s7 = inlined_call_operand.hbm [shape: f32[16,32], index: 7, kind: output, shape index: {}]
  %s8 = sld [smem:[#allocation0]]
  $region38: #{tpu_custom_call.1} parent=0
    _
  %s10 = ssub.s32 1, %s8
  %s11 = scalar_select 0, %s10, %s8
  $region1: #{tpu_custom_call.1} parent=0
    #allocation2 [shape = 'u8[8192]{0}', space=vmem, size = 0x2000, scoped, tag = 'output window, operand 0, single buffered']
    #allocation3 [shape = 's32[1]{0}', space=sflag, size = 0x4, scoped, tag = 'scoped memory for tpu_custom_call.1']
    %12 = vsyncpa [#allocation3], 0
    // Predicated region
    $region2: #{tpu_custom_call.1} parent=1 // pred_check
      _
    $region3: #{tpu_custom_call.1} parent=1 // pred_check_branch
      %14 = sbr.rel (0) target = $region5
    $region4: #{tpu_custom_call.1} parent=1 // pred_region
      _
    $region5: #{tpu_custom_call.1} parent=1 // pred_fallthru
      _
    // Predicated region
    $region6: #{tpu_custom_call.1} parent=1 // pred_check
      _
    $region7: #{tpu_custom_call.1} parent=1 // pred_check_branch
      %16 = sbr.rel (0) target = $region9
    $region8: #{tpu_custom_call.1} parent=1 // pred_region
      _
    $region9: #{tpu_custom_call.1} parent=1 // pred_fallthru
      _
    // Predicated region
    $region10: #{tpu_custom_call.1} parent=1 // pred_check
      _
    $region11: #{tpu_custom_call.1} parent=1 // pred_check_branch
      %18 = sbr.rel (0) target = $region13
    $region12: #{tpu_custom_call.1} parent=1 // pred_region
      _
    $region13: #{tpu_custom_call.1} parent=1 // pred_fallthru
      _
    // Predicated region
    $region14: #{tpu_custom_call.1} parent=1 // pred_check
      _
    $region15: #{tpu_custom_call.1} parent=1 // pred_check_branch
      %20 = sbr.rel (0) target = $region17
    $region16: #{tpu_custom_call.1} parent=1 // pred_region
      _
    $region17: #{tpu_custom_call.1} parent=1 // pred_fallthru
      _
    // Predicated region
    $region18: #{tpu_custom_call.1} parent=1 // pred_check
      _
    $region19: #{tpu_custom_call.1} parent=1 // pred_check_branch
      %22 = sbr.rel (0) target = $region21
    $region20: #{tpu_custom_call.1} parent=1 // pred_region
      _
    $region21: #{tpu_custom_call.1} parent=1 // pred_fallthru
      _
    // Predicated region
    $region22: #{tpu_custom_call.1} parent=1 // pred_check
      _
    $region23: #{tpu_custom_call.1} parent=1 // pred_check_branch
      %24 = sbr.rel (0) target = $region25
    $region24: #{tpu_custom_call.1} parent=1 // pred_region
      _
    $region25: #{tpu_custom_call.1} parent=1 // pred_fallthru
      _
    // Predicated region
    $region26: #{tpu_custom_call.1} parent=1 // pred_check
      _
    $region27: #{tpu_custom_call.1} parent=1 // pred_check_branch
      %26 = sbr.rel (0) target = $region29
    $region28: #{tpu_custom_call.1} parent=1 // pred_region
      _
    $region29: #{tpu_custom_call.1} parent=1 // pred_fallthru
      _
    %v27 = vld [vmem:[%s0] sm:$0xff]
    %v28 = vld [vmem:[%s0 + $0x8] sm:$0xff]
    %v29 = vlaneseq
    %v30 = vand.u32 %v29, 127
    %31 = vset.pattern.permute.xlu0 0
    %32 = vperm.xlu0 %31, %v27
    %v33 = vpop.permute.xlu0 %32
    %34 = vset.pattern.permute.xlu0 0
    %35 = vperm.xlu0 %34, %v28
    %v36 = vpop.permute.xlu0 %35
    %vm37 = vcmp.eq.s32.totalorder %v33, %v30
    %vm38 = vcmp.eq.s32.totalorder %v36, %v30
    %v39 = vsel %vm37, 1, 0
    %v40 = vsel %vm38, 1, 0
    %v41 = vcvt.s32.f32 %v39
    %v42 = vcvt.s32.f32 %v40
    %v43 = vadd.f32 %v41, 0.0
    %v44 = vadd.f32 %v42, 0.0
    %45 = vset.pattern.permute.xlu0 1
    %46 = vperm.xlu0 %45, %v27
    %v47 = vpop.permute.xlu0 %46
    %48 = vset.pattern.permute.xlu0 1
    %49 = vperm.xlu0 %48, %v28
    %v50 = vpop.permute.xlu0 %49
    %vm51 = vcmp.eq.s32.totalorder %v47, %v30
    %vm52 = vcmp.eq.s32.totalorder %v50, %v30
    %v53 = vsel %vm51, 1, 0
    %v54 = vsel %vm52, 1, 0
    %v55 = vcvt.s32.f32 %v53
    %v56 = vcvt.s32.f32 %v54
    %v57 = vadd.f32 %v43, %v55
    %v58 = vadd.f32 %v44, %v56
    %59 = vset.pattern.permute.xlu0 2
    %60 = vperm.xlu0 %59, %v27
    %v61 = vpop.permute.xlu0 %60
    %62 = vset.pattern.permute.xlu0 2
    %63 = vperm.xlu0 %62, %v28
    %v64 = vpop.permute.xlu0 %63
    %vm65 = vcmp.eq.s32.totalorder %v61, %v30
    %vm66 = vcmp.eq.s32.totalorder %v64, %v30
    %v67 = vsel %vm65, 1, 0
    %v68 = vsel %vm66, 1, 0
    %v69 = vcvt.s32.f32 %v67
    %v70 = vcvt.s32.f32 %v68
    %v71 = vadd.f32 %v57, %v69
    %v72 = vadd.f32 %v58, %v70
    %73 = vset.pattern.permute.xlu0 3
    %74 = vperm.xlu0 %73, %v27
    %v75 = vpop.permute.xlu0 %74
    %76 = vset.pattern.permute.xlu0 3
    %77 = vperm.xlu0 %76, %v28
    %v78 = vpop.permute.xlu0 %77
    %vm79 = vcmp.eq.s32.totalorder %v75, %v30
    %vm80 = vcmp.eq.s32.totalorder %v78, %v30
    %v81 = vsel %vm79, 1, 0
    %v82 = vsel %vm80, 1, 0
    %v83 = vcvt.s32.f32 %v81
    %v84 = vcvt.s32.f32 %v82
    %v85 = vadd.f32 %v71, %v83
    %v86 = vadd.f32 %v72, %v84
    %87 = vset.pattern.permute.xlu0 4
    %88 = vperm.xlu0 %87, %v27
    %v89 = vpop.permute.xlu0 %88
    %90 = vset.pattern.permute.xlu0 4
    %91 = vperm.xlu0 %90, %v28
    %v92 = vpop.permute.xlu0 %91
    %vm93 = vcmp.eq.s32.totalorder %v89, %v30
    %vm94 = vcmp.eq.s32.totalorder %v92, %v30
    %v95 = vsel %vm93, 1, 0
    %v96 = vsel %vm94, 1, 0
    %v97 = vcvt.s32.f32 %v95
    %v98 = vcvt.s32.f32 %v96
    %v99 = vadd.f32 %v85, %v97
    %v100 = vadd.f32 %v86, %v98
    %101 = vset.pattern.permute.xlu0 5
    %102 = vperm.xlu0 %101, %v27
    %v103 = vpop.permute.xlu0 %102
    %104 = vset.pattern.permute.xlu0 5
    %105 = vperm.xlu0 %104, %v28
    %v106 = vpop.permute.xlu0 %105
    %vm107 = vcmp.eq.s32.totalorder %v103, %v30
    %vm108 = vcmp.eq.s32.totalorder %v106, %v30
    %v109 = vsel %vm107, 1, 0
    %v110 = vsel %vm108, 1, 0
    %v111 = vcvt.s32.f32 %v109
    %v112 = vcvt.s32.f32 %v110
    %v113 = vadd.f32 %v99, %v111
    %v114 = vadd.f32 %v100, %v112
    %115 = vset.pattern.permute.xlu0 6
    %116 = vperm.xlu0 %115, %v27
    %v117 = vpop.permute.xlu0 %116
    %118 = vset.pattern.permute.xlu0 6
    %119 = vperm.xlu0 %118, %v28
    %v120 = vpop.permute.xlu0 %119
    %vm121 = vcmp.eq.s32.totalorder %v117, %v30
    %vm122 = vcmp.eq.s32.totalorder %v120, %v30
    %v123 = vsel %vm121, 1, 0
    %v124 = vsel %vm122, 1, 0
    %v125 = vcvt.s32.f32 %v123
    %v126 = vcvt.s32.f32 %v124
    %v127 = vadd.f32 %v113, %v125
    %v128 = vadd.f32 %v114, %v126
    %129 = vset.pattern.permute.xlu0 7
    %130 = vperm.xlu0 %129, %v27
    %v131 = vpop.permute.xlu0 %130
    %132 = vset.pattern.permute.xlu0 7
    %133 = vperm.xlu0 %132, %v28
    %v134 = vpop.permute.xlu0 %133
    %vm135 = vcmp.eq.s32.totalorder %v131, %v30
    %vm136 = vcmp.eq.s32.totalorder %v134, %v30
    %v137 = vsel %vm135, 1, 0
    %v138 = vsel %vm136, 1, 0
    %v139 = vcvt.s32.f32 %v137
    %v140 = vcvt.s32.f32 %v138
    %v141 = vadd.f32 %v127, %v139
    %v142 = vadd.f32 %v128, %v140
    %v143 = vld [vmem:[%s4] sm:$0x1]
    %v144 = vld [vmem:[%s2] sm:$0xff]
    %v145 = vld [vmem:[%s2 + $0x8] sm:$0xff]
    %v146 = vld [vmem:[%s2 + $0x10] sm:$0xff]
    %v147 = vld [vmem:[%s2 + $0x18] sm:$0xff]
    %v148 = vld [vmem:[%s2 + $0x20] sm:$0xff]
    %v149 = vld [vmem:[%s2 + $0x28] sm:$0xff]
    %v150 = vld [vmem:[%s2 + $0x30] sm:$0x3]
    %v152 = vlaneseq
    %v153 = vshrl.u32 %v152, 7
    %v154 = vsub.s32 0, %v153
    %v155 = vrot.slane %v143, %v154
    %vm157 = vcmask 408576
    %v159 = vsel %vm157, %v141, 0
    %v162 = vsel %vm157, %v142, 0
    %vm164 = vcmask 1041408
    %v166 = vsel %vm164, %v150, 0
    %168 = vmatprep.subr.mxu0 0.0
    %169 = vmatpush1.msra.mxu0 0.0
    %170 = vmatprep.subr.mxu0 0.0
    %171 = vmatpush1.msra.mxu0 0.0
    %172 = vmatprep.subr.mxu0 0.0
    %173 = vmatpush1.msra.mxu0 0.0
    %174 = vmatprep.subr.mxu0 0.0
    %175 = vmatpush1.msra.mxu0 0.0
    %176 = vmatprep.subr.mxu0 0.0
    %177 = vmatpush1.msra.mxu0 0.0
    %178 = vmatprep.subr.mxu0 0.0
    %179 = vmatpush1.msra.mxu0 0.0
    %180 = vmatprep.subr.mxu0 0.0
    %181 = vmatpush1.msra.mxu0 0.0
    %182 = vmatprep.subr.mxu0 0.0
    %183 = vmatpush1.msra.mxu0 0.0
    %184 = vmatprep.subr.mxu0 0.0
    %185 = vmatpush1.msra.mxu0 0.0
    %186 = vmatprep.subr.mxu0 0.0
    %187 = vmatpush1.msra.mxu0 %v166
    %188 = vmatprep.subr.mxu0 0.0
    %189 = vmatpush1.msra.mxu0 %v149
    %190 = vmatprep.subr.mxu0 0.0
    %191 = vmatpush1.msra.mxu0 %v148
    %192 = vmatprep.subr.mxu0 0.0
    %193 = vmatpush1.msra.mxu0 %v147
    %194 = vmatprep.subr.mxu0 0.0
    %195 = vmatpush1.msra.mxu0 %v146
    %196 = vmatprep.subr.mxu0 0.0
    %197 = vmatpush1.msra.mxu0 %v145
    %198 = vmatprep.subr.mxu0 0.0
    %199 = vmatpush1.msra.mxu0 %v144
    %200 = vmatprep.subr.mxu0 0.0
    %201 = vmatpush2.msra.mxu0 0.0
    %202 = vmatprep.subr.mxu0 0.0
    %203 = vmatpush2.msra.mxu0 0.0
    %204 = vmatprep.subr.mxu0 0.0
    %205 = vmatpush2.msra.mxu0 0.0
    %206 = vmatprep.subr.mxu0 0.0
    %207 = vmatpush2.msra.mxu0 0.0
    %208 = vmatprep.subr.mxu0 0.0
    %209 = vmatpush2.msra.mxu0 0.0
    %210 = vmatprep.subr.mxu0 0.0
    %211 = vmatpush2.msra.mxu0 0.0
    %212 = vmatprep.subr.mxu0 0.0
    %213 = vmatpush2.msra.mxu0 0.0
    %214 = vmatprep.subr.mxu0 0.0
    %215 = vmatpush2.msra.mxu0 0.0
    %216 = vmatprep.subr.mxu0 0.0
    %217 = vmatpush2.msra.mxu0 0.0
    %218 = vmatprep.subr.mxu0 0.0
    %219 = vmatpush2.msra.mxu0 0.0
    %220 = vmatprep.subr.mxu0 0.0
    %221 = vmatpush2.msra.mxu0 0.0
    %222 = vmatprep.subr.mxu0 0.0
    %223 = vmatpush2.msra.mxu0 0.0
    %224 = vmatprep.subr.mxu0 0.0
    %225 = vmatpush2.msra.mxu0 0.0
    %226 = vmatprep.subr.mxu0 0.0
    %227 = vmatpush2.msra.mxu0 0.0
    %228 = vmatprep.subr.mxu0 0.0
    %229 = vmatpush2.msra.mxu0 0.0
    %230 = vmatprep.subr.mxu0 0.0
    %231 = vmatpush2.msra.mxu0 0.0
    %232 = vmatprep.mubr.f32.mxu0 0.0
    %233 = vmatmul.mubr.f32.gmra.mxu0 %v159
    %v234 = vpop.f32.mrf.mxu0
    %v235 = vadd.f32 %v155, %v234
    %v236 = vpop.f32.mrf.mxu0
    %237 = vmatprep.mubr.f32.mxu0 0.0
    %238 = vmatmul.mubr.f32.gmra.mxu0 %v162
    %v239 = vpop.f32.mrf.mxu0
    %v240 = vadd.f32 %v155, %v239
    %v241 = vpop.f32.mrf.mxu0
    %242 = vdwg.mxu0
    %v243 = vld [vmem:[%s3] sm:$0xff]
    %v244 = vld [vmem:[%s3 + $0x8] sm:$0xff]
    %v245 = vld [vmem:[%s3 + $0x10] sm:$0xff]
    %v246 = vld [vmem:[%s3 + $0x18] sm:$0xff]
    %v247 = vld [vmem:[%s3 + $0x20] sm:$0xff]
    %v248 = vld [vmem:[%s3 + $0x28] sm:$0xff]
    %v249 = vld [vmem:[%s3 + $0x30] sm:$0x3]
    %v251 = vsel %vm164, %v249, 0
    %253 = vmatprep.subr.mxu0 0.0
    %254 = vmatpush1.msra.mxu0 0.0
    %255 = vmatprep.subr.mxu0 0.0
    %256 = vmatpush1.msra.mxu0 0.0
    %257 = vmatprep.subr.mxu0 0.0
    %258 = vmatpush1.msra.mxu0 0.0
    %259 = vmatprep.subr.mxu0 0.0
    %260 = vmatpush1.msra.mxu0 0.0
    %261 = vmatprep.subr.mxu0 0.0
    %262 = vmatpush1.msra.mxu0 0.0
    %263 = vmatprep.subr.mxu0 0.0
    %264 = vmatpush1.msra.mxu0 0.0
    %265 = vmatprep.subr.mxu0 0.0
    %266 = vmatpush1.msra.mxu0 0.0
    %267 = vmatprep.subr.mxu0 0.0
    %268 = vmatpush1.msra.mxu0 0.0
    %269 = vmatprep.subr.mxu0 0.0
    %270 = vmatpush1.msra.mxu0 0.0
    %271 = vmatprep.subr.mxu0 0.0
    %272 = vmatpush1.msra.mxu0 %v251
    %273 = vmatprep.subr.mxu0 0.0
    %274 = vmatpush1.msra.mxu0 %v248
    %275 = vmatprep.subr.mxu0 0.0
    %276 = vmatpush1.msra.mxu0 %v247
    %277 = vmatprep.subr.mxu0 0.0
    %278 = vmatpush1.msra.mxu0 %v246
    %279 = vmatprep.subr.mxu0 0.0
    %280 = vmatpush1.msra.mxu0 %v245
    %281 = vmatprep.subr.mxu0 0.0
    %282 = vmatpush1.msra.mxu0 %v244
    %283 = vmatprep.subr.mxu0 0.0
    %284 = vmatpush1.msra.mxu0 %v243
    %285 = vmatprep.subr.mxu0 0.0
    %286 = vmatpush2.msra.mxu0 0.0
    %287 = vmatprep.subr.mxu0 0.0
    %288 = vmatpush2.msra.mxu0 0.0
    %289 = vmatprep.subr.mxu0 0.0
    %290 = vmatpush2.msra.mxu0 0.0
    %291 = vmatprep.subr.mxu0 0.0
    %292 = vmatpush2.msra.mxu0 0.0
    %293 = vmatprep.subr.mxu0 0.0
    %294 = vmatpush2.msra.mxu0 0.0
    %295 = vmatprep.subr.mxu0 0.0
    %296 = vmatpush2.msra.mxu0 0.0
    %297 = vmatprep.subr.mxu0 0.0
    %298 = vmatpush2.msra.mxu0 0.0
    %299 = vmatprep.subr.mxu0 0.0
    %300 = vmatpush2.msra.mxu0 0.0
    %301 = vmatprep.subr.mxu0 0.0
    %302 = vmatpush2.msra.mxu0 0.0
    %303 = vmatprep.subr.mxu0 0.0
    %304 = vmatpush2.msra.mxu0 0.0
    %305 = vmatprep.subr.mxu0 0.0
    %306 = vmatpush2.msra.mxu0 0.0
    %307 = vmatprep.subr.mxu0 0.0
    %308 = vmatpush2.msra.mxu0 0.0
    %309 = vmatprep.subr.mxu0 0.0
    %310 = vmatpush2.msra.mxu0 0.0
    %311 = vmatprep.subr.mxu0 0.0
    %312 = vmatpush2.msra.mxu0 0.0
    %313 = vmatprep.subr.mxu0 0.0
    %314 = vmatpush2.msra.mxu0 0.0
    %315 = vmatprep.subr.mxu0 0.0
    %316 = vmatpush2.msra.mxu0 0.0
    %317 = vmatprep.mubr.f32.mxu0 0.0
    %318 = vmatmul.mubr.f32.gmra.mxu0 %v159
    %v319 = vpop.f32.mrf.mxu0
    %v320 = vadd.f32 %v155, %v319
    %v321 = vpop.f32.mrf.mxu0
    %322 = vmatprep.mubr.f32.mxu0 0.0
    %323 = vmatmul.mubr.f32.gmra.mxu0 %v162
    %v324 = vpop.f32.mrf.mxu0
    %v325 = vadd.f32 %v155, %v324
    %v326 = vpop.f32.mrf.mxu0
    %327 = vdwg.mxu0
    %v328 = vcvt.s32.f32 %v27
    %v329 = vcvt.s32.f32 %v28
    %vm330 = vcmask 64512
    %v332 = vsel %vm330, 1.0, 0
    %v335 = vsel %vm330, %v328, 0
    %337 = vmatprep.subr.mxu0 0.0
    %338 = vmatpush1.xpose.msra.mxu0 0.0
    %339 = vmatprep.subr.mxu0 0.0
    %340 = vmatpush1.xpose.msra.mxu0 0.0
    %341 = vmatprep.subr.mxu0 0.0
    %342 = vmatpush1.xpose.msra.mxu0 0.0
    %343 = vmatprep.subr.mxu0 0.0
    %344 = vmatpush1.xpose.msra.mxu0 0.0
    %345 = vmatprep.subr.mxu0 0.0
    %346 = vmatpush1.xpose.msra.mxu0 0.0
    %347 = vmatprep.subr.mxu0 0.0
    %348 = vmatpush1.xpose.msra.mxu0 0.0
    %349 = vmatprep.subr.mxu0 0.0
    %350 = vmatpush1.xpose.msra.mxu0 0.0
    %351 = vmatprep.subr.mxu0 0.0
    %352 = vmatpush1.xpose.msra.mxu0 0.0
    %353 = vmatprep.subr.mxu0 0.0
    %354 = vmatpush1.xpose.msra.mxu0 0.0
    %355 = vmatprep.subr.mxu0 0.0
    %356 = vmatpush1.xpose.msra.mxu0 0.0
    %357 = vmatprep.subr.mxu0 0.0
    %358 = vmatpush1.xpose.msra.mxu0 0.0
    %359 = vmatprep.subr.mxu0 0.0
    %360 = vmatpush1.xpose.msra.mxu0 0.0
    %361 = vmatprep.subr.mxu0 0.0
    %362 = vmatpush1.xpose.msra.mxu0 0.0
    %363 = vmatprep.subr.mxu0 0.0
    %364 = vmatpush1.xpose.msra.mxu0 0.0
    %365 = vmatprep.subr.mxu0 0.0
    %366 = vmatpush1.xpose.msra.mxu0 0.0
    %367 = vmatprep.subr.mxu0 0.0
    %368 = vmatpush1.xpose.msra.mxu0 %v335
    %369 = vmatprep.subr.mxu0 0.0
    %370 = vmatpush2.xpose.msra.mxu0 0.0
    %371 = vmatprep.subr.mxu0 0.0
    %372 = vmatpush2.xpose.msra.mxu0 0.0
    %373 = vmatprep.subr.mxu0 0.0
    %374 = vmatpush2.xpose.msra.mxu0 0.0
    %375 = vmatprep.subr.mxu0 0.0
    %376 = vmatpush2.xpose.msra.mxu0 0.0
    %377 = vmatprep.subr.mxu0 0.0
    %378 = vmatpush2.xpose.msra.mxu0 0.0
    %379 = vmatprep.subr.mxu0 0.0
    %380 = vmatpush2.xpose.msra.mxu0 0.0
    %381 = vmatprep.subr.mxu0 0.0
    %382 = vmatpush2.xpose.msra.mxu0 0.0
    %383 = vmatprep.subr.mxu0 0.0
    %384 = vmatpush2.xpose.msra.mxu0 0.0
    %385 = vmatprep.subr.mxu0 0.0
    %386 = vmatpush2.xpose.msra.mxu0 0.0
    %387 = vmatprep.subr.mxu0 0.0
    %388 = vmatpush2.xpose.msra.mxu0 0.0
    %389 = vmatprep.subr.mxu0 0.0
    %390 = vmatpush2.xpose.msra.mxu0 0.0
    %391 = vmatprep.subr.mxu0 0.0
    %392 = vmatpush2.xpose.msra.mxu0 0.0
    %393 = vmatprep.subr.mxu0 0.0
    %394 = vmatpush2.xpose.msra.mxu0 0.0
    %395 = vmatprep.subr.mxu0 0.0
    %396 = vmatpush2.xpose.msra.mxu0 0.0
    %397 = vmatprep.subr.mxu0 0.0
    %398 = vmatpush2.xpose.msra.mxu0 0.0
    %399 = vmatprep.subr.mxu0 0.0
    %400 = vmatpush2.xpose.msra.mxu0 0.0
    %401 = vmatprep.mubr.f32.mxu0 0.0
    %402 = vmatmul.mubr.f32.gmra.mxu0 %v332
    %v403 = vpop.f32.mrf.mxu0
    %v404 = vadd.f32 0.0, %v403
    %v405 = vpop.f32.mrf.mxu0
    %406 = vdwg.mxu0
    %v408 = vsel %vm330, %v329, 0
    %410 = vmatprep.subr.mxu0 0.0
    %411 = vmatpush1.xpose.msra.mxu0 0.0
    %412 = vmatprep.subr.mxu0 0.0
    %413 = vmatpush1.xpose.msra.mxu0 0.0
    %414 = vmatprep.subr.mxu0 0.0
    %415 = vmatpush1.xpose.msra.mxu0 0.0
    %416 = vmatprep.subr.mxu0 0.0
    %417 = vmatpush1.xpose.msra.mxu0 0.0
    %418 = vmatprep.subr.mxu0 0.0
    %419 = vmatpush1.xpose.msra.mxu0 0.0
    %420 = vmatprep.subr.mxu0 0.0
    %421 = vmatpush1.xpose.msra.mxu0 0.0
    %422 = vmatprep.subr.mxu0 0.0
    %423 = vmatpush1.xpose.msra.mxu0 0.0
    %424 = vmatprep.subr.mxu0 0.0
    %425 = vmatpush1.xpose.msra.mxu0 0.0
    %426 = vmatprep.subr.mxu0 0.0
    %427 = vmatpush1.xpose.msra.mxu0 0.0
    %428 = vmatprep.subr.mxu0 0.0
    %429 = vmatpush1.xpose.msra.mxu0 0.0
    %430 = vmatprep.subr.mxu0 0.0
    %431 = vmatpush1.xpose.msra.mxu0 0.0
    %432 = vmatprep.subr.mxu0 0.0
    %433 = vmatpush1.xpose.msra.mxu0 0.0
    %434 = vmatprep.subr.mxu0 0.0
    %435 = vmatpush1.xpose.msra.mxu0 0.0
    %436 = vmatprep.subr.mxu0 0.0
    %437 = vmatpush1.xpose.msra.mxu0 0.0
    %438 = vmatprep.subr.mxu0 0.0
    %439 = vmatpush1.xpose.msra.mxu0 0.0
    %440 = vmatprep.subr.mxu0 0.0
    %441 = vmatpush1.xpose.msra.mxu0 %v408
    %442 = vmatprep.subr.mxu0 0.0
    %443 = vmatpush2.xpose.msra.mxu0 0.0
    %444 = vmatprep.subr.mxu0 0.0
    %445 = vmatpush2.xpose.msra.mxu0 0.0
    %446 = vmatprep.subr.mxu0 0.0
    %447 = vmatpush2.xpose.msra.mxu0 0.0
    %448 = vmatprep.subr.mxu0 0.0
    %449 = vmatpush2.xpose.msra.mxu0 0.0
    %450 = vmatprep.subr.mxu0 0.0
    %451 = vmatpush2.xpose.msra.mxu0 0.0
    %452 = vmatprep.subr.mxu0 0.0
    %453 = vmatpush2.xpose.msra.mxu0 0.0
    %454 = vmatprep.subr.mxu0 0.0
    %455 = vmatpush2.xpose.msra.mxu0 0.0
    %456 = vmatprep.subr.mxu0 0.0
    %457 = vmatpush2.xpose.msra.mxu0 0.0
    %458 = vmatprep.subr.mxu0 0.0
    %459 = vmatpush2.xpose.msra.mxu0 0.0
    %460 = vmatprep.subr.mxu0 0.0
    %461 = vmatpush2.xpose.msra.mxu0 0.0
    %462 = vmatprep.subr.mxu0 0.0
    %463 = vmatpush2.xpose.msra.mxu0 0.0
    %464 = vmatprep.subr.mxu0 0.0
    %465 = vmatpush2.xpose.msra.mxu0 0.0
    %466 = vmatprep.subr.mxu0 0.0
    %467 = vmatpush2.xpose.msra.mxu0 0.0
    %468 = vmatprep.subr.mxu0 0.0
    %469 = vmatpush2.xpose.msra.mxu0 0.0
    %470 = vmatprep.subr.mxu0 0.0
    %471 = vmatpush2.xpose.msra.mxu0 0.0
    %472 = vmatprep.subr.mxu0 0.0
    %473 = vmatpush2.xpose.msra.mxu0 0.0
    %474 = vmatprep.mubr.f32.mxu0 0.0
    %475 = vmatmul.mubr.f32.gmra.mxu0 %v332
    %v476 = vpop.f32.mrf.mxu0
    %v477 = vadd.f32 0.0, %v476
    %v478 = vpop.f32.mrf.mxu0
    %479 = vdwg.mxu0
    %v480 = vld [vmem:[%s1] sm:$0xff]
    %v481 = vld [vmem:[%s1 + $0x8] sm:$0xff]
    %vm482 = vcmask 261120
    %v484 = vsel %vm482, %v480, 0
    %v487 = vsel %vm482, %v235, 0
    %489 = vmatprep.subr.mxu0 0.0
    %490 = vmatpush1.xpose.msra.mxu0 0.0
    %491 = vmatprep.subr.mxu0 0.0
    %492 = vmatpush1.xpose.msra.mxu0 0.0
    %493 = vmatprep.subr.mxu0 0.0
    %494 = vmatpush1.xpose.msra.mxu0 0.0
    %495 = vmatprep.subr.mxu0 0.0
    %496 = vmatpush1.xpose.msra.mxu0 0.0
    %497 = vmatprep.subr.mxu0 0.0
    %498 = vmatpush1.xpose.msra.mxu0 0.0
    %499 = vmatprep.subr.mxu0 0.0
    %500 = vmatpush1.xpose.msra.mxu0 0.0
    %501 = vmatprep.subr.mxu0 0.0
    %502 = vmatpush1.xpose.msra.mxu0 0.0
    %503 = vmatprep.subr.mxu0 0.0
    %504 = vmatpush1.xpose.msra.mxu0 0.0
    %505 = vmatprep.subr.mxu0 0.0
    %506 = vmatpush1.xpose.msra.mxu0 0.0
    %507 = vmatprep.subr.mxu0 0.0
    %508 = vmatpush1.xpose.msra.mxu0 0.0
    %509 = vmatprep.subr.mxu0 0.0
    %510 = vmatpush1.xpose.msra.mxu0 0.0
    %511 = vmatprep.subr.mxu0 0.0
    %512 = vmatpush1.xpose.msra.mxu0 0.0
    %513 = vmatprep.subr.mxu0 0.0
    %514 = vmatpush1.xpose.msra.mxu0 0.0
    %515 = vmatprep.subr.mxu0 0.0
    %516 = vmatpush1.xpose.msra.mxu0 0.0
    %517 = vmatprep.subr.mxu0 0.0
    %518 = vmatpush1.xpose.msra.mxu0 0.0
    %519 = vmatprep.subr.mxu0 0.0
    %520 = vmatpush1.xpose.msra.mxu0 %v487
    %521 = vmatprep.subr.mxu0 0.0
    %522 = vmatpush2.xpose.msra.mxu0 0.0
    %523 = vmatprep.subr.mxu0 0.0
    %524 = vmatpush2.xpose.msra.mxu0 0.0
    %525 = vmatprep.subr.mxu0 0.0
    %526 = vmatpush2.xpose.msra.mxu0 0.0
    %527 = vmatprep.subr.mxu0 0.0
    %528 = vmatpush2.xpose.msra.mxu0 0.0
    %529 = vmatprep.subr.mxu0 0.0
    %530 = vmatpush2.xpose.msra.mxu0 0.0
    %531 = vmatprep.subr.mxu0 0.0
    %532 = vmatpush2.xpose.msra.mxu0 0.0
    %533 = vmatprep.subr.mxu0 0.0
    %534 = vmatpush2.xpose.msra.mxu0 0.0
    %535 = vmatprep.subr.mxu0 0.0
    %536 = vmatpush2.xpose.msra.mxu0 0.0
    %537 = vmatprep.subr.mxu0 0.0
    %538 = vmatpush2.xpose.msra.mxu0 0.0
    %539 = vmatprep.subr.mxu0 0.0
    %540 = vmatpush2.xpose.msra.mxu0 0.0
    %541 = vmatprep.subr.mxu0 0.0
    %542 = vmatpush2.xpose.msra.mxu0 0.0
    %543 = vmatprep.subr.mxu0 0.0
    %544 = vmatpush2.xpose.msra.mxu0 0.0
    %545 = vmatprep.subr.mxu0 0.0
    %546 = vmatpush2.xpose.msra.mxu0 0.0
    %547 = vmatprep.subr.mxu0 0.0
    %548 = vmatpush2.xpose.msra.mxu0 0.0
    %549 = vmatprep.subr.mxu0 0.0
    %550 = vmatpush2.xpose.msra.mxu0 0.0
    %551 = vmatprep.subr.mxu0 0.0
    %552 = vmatpush2.xpose.msra.mxu0 0.0
    %553 = vmatprep.mubr.f32.mxu0 0.0
    %554 = vmatmul.mubr.f32.gmra.mxu0 %v484
    %v555 = vpop.f32.mrf.mxu0
    %v556 = vadd.f32 0.0, %v555
    %v557 = vpop.f32.mrf.mxu0
    %558 = vdwg.mxu0
    %v560 = vsel %vm482, %v481, 0
    %v563 = vsel %vm482, %v240, 0
    %565 = vmatprep.subr.mxu0 0.0
    %566 = vmatpush1.xpose.msra.mxu0 0.0
    %567 = vmatprep.subr.mxu0 0.0
    %568 = vmatpush1.xpose.msra.mxu0 0.0
    %569 = vmatprep.subr.mxu0 0.0
    %570 = vmatpush1.xpose.msra.mxu0 0.0
    %571 = vmatprep.subr.mxu0 0.0
    %572 = vmatpush1.xpose.msra.mxu0 0.0
    %573 = vmatprep.subr.mxu0 0.0
    %574 = vmatpush1.xpose.msra.mxu0 0.0
    %575 = vmatprep.subr.mxu0 0.0
    %576 = vmatpush1.xpose.msra.mxu0 0.0
    %577 = vmatprep.subr.mxu0 0.0
    %578 = vmatpush1.xpose.msra.mxu0 0.0
    %579 = vmatprep.subr.mxu0 0.0
    %580 = vmatpush1.xpose.msra.mxu0 0.0
    %581 = vmatprep.subr.mxu0 0.0
    %582 = vmatpush1.xpose.msra.mxu0 0.0
    %583 = vmatprep.subr.mxu0 0.0
    %584 = vmatpush1.xpose.msra.mxu0 0.0
    %585 = vmatprep.subr.mxu0 0.0
    %586 = vmatpush1.xpose.msra.mxu0 0.0
    %587 = vmatprep.subr.mxu0 0.0
    %588 = vmatpush1.xpose.msra.mxu0 0.0
    %589 = vmatprep.subr.mxu0 0.0
    %590 = vmatpush1.xpose.msra.mxu0 0.0
    %591 = vmatprep.subr.mxu0 0.0
    %592 = vmatpush1.xpose.msra.mxu0 0.0
    %593 = vmatprep.subr.mxu0 0.0
    %594 = vmatpush1.xpose.msra.mxu0 0.0
    %595 = vmatprep.subr.mxu0 0.0
    %596 = vmatpush1.xpose.msra.mxu0 %v563
    %597 = vmatprep.subr.mxu0 0.0
    %598 = vmatpush2.xpose.msra.mxu0 0.0
    %599 = vmatprep.subr.mxu0 0.0
    %600 = vmatpush2.xpose.msra.mxu0 0.0
    %601 = vmatprep.subr.mxu0 0.0
    %602 = vmatpush2.xpose.msra.mxu0 0.0
    %603 = vmatprep.subr.mxu0 0.0
    %604 = vmatpush2.xpose.msra.mxu0 0.0
    %605 = vmatprep.subr.mxu0 0.0
    %606 = vmatpush2.xpose.msra.mxu0 0.0
    %607 = vmatprep.subr.mxu0 0.0
    %608 = vmatpush2.xpose.msra.mxu0 0.0
    %609 = vmatprep.subr.mxu0 0.0
    %610 = vmatpush2.xpose.msra.mxu0 0.0
    %611 = vmatprep.subr.mxu0 0.0
    %612 = vmatpush2.xpose.msra.mxu0 0.0
    %613 = vmatprep.subr.mxu0 0.0
    %614 = vmatpush2.xpose.msra.mxu0 0.0
    %615 = vmatprep.subr.mxu0 0.0
    %616 = vmatpush2.xpose.msra.mxu0 0.0
    %617 = vmatprep.subr.mxu0 0.0
    %618 = vmatpush2.xpose.msra.mxu0 0.0
    %619 = vmatprep.subr.mxu0 0.0
    %620 = vmatpush2.xpose.msra.mxu0 0.0
    %621 = vmatprep.subr.mxu0 0.0
    %622 = vmatpush2.xpose.msra.mxu0 0.0
    %623 = vmatprep.subr.mxu0 0.0
    %624 = vmatpush2.xpose.msra.mxu0 0.0
    %625 = vmatprep.subr.mxu0 0.0
    %626 = vmatpush2.xpose.msra.mxu0 0.0
    %627 = vmatprep.subr.mxu0 0.0
    %628 = vmatpush2.xpose.msra.mxu0 0.0
    %629 = vmatprep.mubr.f32.mxu0 0.0
    %630 = vmatmul.mubr.f32.gmra.mxu0 %v560
    %v631 = vpop.f32.mrf.mxu0
    %v632 = vadd.f32 0.0, %v631
    %v633 = vpop.f32.mrf.mxu0
    %634 = vdwg.mxu0
    %v635 = vmul.f32 %v556, 0.17677669
    %v636 = vmul.f32 %v632, 0.17677669
    %vm637 = vcmp.eq.f32.partialorder %v404, 0.0
    %vm638 = vcmp.eq.f32.partialorder %v477, 0.0
    %v639 = vsel %vm637, 1, 0
    %v640 = vsel %vm638, 1, 0
    %v641 = vlaneseq
    %v642 = vshrl.u32 %v641, 7
    %v643 = vsub.s32 0, %v642
    %v644 = vrot.slane %v639, %v643
    %v645 = vlaneseq
    %v646 = vshrl.u32 %v645, 7
    %v647 = vsub.s32 0, %v646
    %v648 = vrot.slane %v640, %v647
    %vm649 = vcmp.eq.s32.totalorder %v644, 1
    %vm650 = vcmp.eq.s32.totalorder %v648, 1
    %v651 = vsel %vm649, -1e+09, %v635
    %v652 = vsel %vm650, -1e+09, %v636
    %v653 = vsel %vm330, %v651, -inf
    %v654 = vrot.slane %v653, 4
    %v655 = vmax.f32 %v653, %v654
    %v656 = vrot.slane %v655, 2
    %v657 = vmax.f32 %v655, %v656
    %v658 = vrot.slane %v657, 1
    %v659 = vmax.f32 %v657, %v658
    %v660 = vsel %vm330, %v652, -inf
    %v661 = vrot.slane %v660, 4
    %v662 = vmax.f32 %v660, %v661
    %v663 = vrot.slane %v662, 2
    %v664 = vmax.f32 %v662, %v663
    %v665 = vrot.slane %v664, 1
    %v666 = vmax.f32 %v664, %v665
    %v667 = vsub.f32 %v651, %v659
    %v668 = vsub.f32 %v652, %v666
    %v669 = vmul.f32 %v667, 1.442695
    %v670 = vpow.pop %v669
    %v671 = vmul.f32 %v668, 1.442695
    %v672 = vpow.pop %v671
    %v673 = vsel %vm330, %v670, 0.0
    %v674 = vrot.slane %v673, 4
    %v675 = vadd.f32 %v673, %v674
    %v676 = vrot.slane %v675, 2
    %v677 = vadd.f32 %v675, %v676
    %v678 = vrot.slane %v677, 1
    %v679 = vadd.f32 %v677, %v678
    %v680 = vsel %vm330, %v672, 0.0
    %v681 = vrot.slane %v680, 4
    %v682 = vadd.f32 %v680, %v681
    %v683 = vrot.slane %v682, 2
    %v684 = vadd.f32 %v682, %v683
    %v685 = vrot.slane %v684, 1
    %v686 = vadd.f32 %v684, %v685
    %v687 = vrcp.pop %v679
    %v688 = vrcp.pop %v686
    %v689 = vmul.f32 %v670, %v687
    %v690 = vmul.f32 %v672, %v688
    %v692 = vsel %vm330, %v689, 0
    %694 = vmatprep.subr.mxu0 0.0
    %695 = vmatpush1.msra.mxu0 0.0
    %696 = vmatprep.subr.mxu0 0.0
    %697 = vmatpush1.msra.mxu0 0.0
    %698 = vmatprep.subr.mxu0 0.0
    %699 = vmatpush1.msra.mxu0 0.0
    %700 = vmatprep.subr.mxu0 0.0
    %701 = vmatpush1.msra.mxu0 0.0
    %702 = vmatprep.subr.mxu0 0.0
    %703 = vmatpush1.msra.mxu0 0.0
    %704 = vmatprep.subr.mxu0 0.0
    %705 = vmatpush1.msra.mxu0 0.0
    %706 = vmatprep.subr.mxu0 0.0
    %707 = vmatpush1.msra.mxu0 0.0
    %708 = vmatprep.subr.mxu0 0.0
    %709 = vmatpush1.msra.mxu0 0.0
    %710 = vmatprep.subr.mxu0 0.0
    %711 = vmatpush1.msra.mxu0 0.0
    %712 = vmatprep.subr.mxu0 0.0
    %713 = vmatpush1.msra.mxu0 0.0
    %714 = vmatprep.subr.mxu0 0.0
    %715 = vmatpush1.msra.mxu0 0.0
    %716 = vmatprep.subr.mxu0 0.0
    %717 = vmatpush1.msra.mxu0 0.0
    %718 = vmatprep.subr.mxu0 0.0
    %719 = vmatpush1.msra.mxu0 0.0
    %720 = vmatprep.subr.mxu0 0.0
    %721 = vmatpush1.msra.mxu0 0.0
    %722 = vmatprep.subr.mxu0 0.0
    %723 = vmatpush1.msra.mxu0 0.0
    %724 = vmatprep.subr.mxu0 0.0
    %725 = vmatpush1.msra.mxu0 %v320
    %726 = vmatprep.subr.mxu0 0.0
    %727 = vmatpush2.msra.mxu0 0.0
    %728 = vmatprep.subr.mxu0 0.0
    %729 = vmatpush2.msra.mxu0 0.0
    %730 = vmatprep.subr.mxu0 0.0
    %731 = vmatpush2.msra.mxu0 0.0
    %732 = vmatprep.subr.mxu0 0.0
    %733 = vmatpush2.msra.mxu0 0.0
    %734 = vmatprep.subr.mxu0 0.0
    %735 = vmatpush2.msra.mxu0 0.0
    %736 = vmatprep.subr.mxu0 0.0
    %737 = vmatpush2.msra.mxu0 0.0
    %738 = vmatprep.subr.mxu0 0.0
    %739 = vmatpush2.msra.mxu0 0.0
    %740 = vmatprep.subr.mxu0 0.0
    %741 = vmatpush2.msra.mxu0 0.0
    %742 = vmatprep.subr.mxu0 0.0
    %743 = vmatpush2.msra.mxu0 0.0
    %744 = vmatprep.subr.mxu0 0.0
    %745 = vmatpush2.msra.mxu0 0.0
    %746 = vmatprep.subr.mxu0 0.0
    %747 = vmatpush2.msra.mxu0 0.0
    %748 = vmatprep.subr.mxu0 0.0
    %749 = vmatpush2.msra.mxu0 0.0
    %750 = vmatprep.subr.mxu0 0.0
    %751 = vmatpush2.msra.mxu0 0.0
    %752 = vmatprep.subr.mxu0 0.0
    %753 = vmatpush2.msra.mxu0 0.0
    %754 = vmatprep.subr.mxu0 0.0
    %755 = vmatpush2.msra.mxu0 0.0
    %756 = vmatprep.subr.mxu0 0.0
    %757 = vmatpush2.msra.mxu0 0.0
    %758 = vmatprep.mubr.f32.mxu0 0.0
    %759 = vmatmul.mubr.f32.gmra.mxu0 %v692
    %v760 = vpop.f32.mrf.mxu0
    %v761 = vadd.f32 %v480, %v760
    %v762 = vpop.f32.mrf.mxu0
    %763 = vdwg.mxu0
    %v765 = vsel %vm330, %v690, 0
    %767 = vmatprep.subr.mxu0 0.0
    %768 = vmatpush1.msra.mxu0 0.0
    %769 = vmatprep.subr.mxu0 0.0
    %770 = vmatpush1.msra.mxu0 0.0
    %771 = vmatprep.subr.mxu0 0.0
    %772 = vmatpush1.msra.mxu0 0.0
    %773 = vmatprep.subr.mxu0 0.0
    %774 = vmatpush1.msra.mxu0 0.0
    %775 = vmatprep.subr.mxu0 0.0
    %776 = vmatpush1.msra.mxu0 0.0
    %777 = vmatprep.subr.mxu0 0.0
    %778 = vmatpush1.msra.mxu0 0.0
    %779 = vmatprep.subr.mxu0 0.0
    %780 = vmatpush1.msra.mxu0 0.0
    %781 = vmatprep.subr.mxu0 0.0
    %782 = vmatpush1.msra.mxu0 0.0
    %783 = vmatprep.subr.mxu0 0.0
    %784 = vmatpush1.msra.mxu0 0.0
    %785 = vmatprep.subr.mxu0 0.0
    %786 = vmatpush1.msra.mxu0 0.0
    %787 = vmatprep.subr.mxu0 0.0
    %788 = vmatpush1.msra.mxu0 0.0
    %789 = vmatprep.subr.mxu0 0.0
    %790 = vmatpush1.msra.mxu0 0.0
    %791 = vmatprep.subr.mxu0 0.0
    %792 = vmatpush1.msra.mxu0 0.0
    %793 = vmatprep.subr.mxu0 0.0
    %794 = vmatpush1.msra.mxu0 0.0
    %795 = vmatprep.subr.mxu0 0.0
    %796 = vmatpush1.msra.mxu0 0.0
    %797 = vmatprep.subr.mxu0 0.0
    %798 = vmatpush1.msra.mxu0 %v325
    %799 = vmatprep.subr.mxu0 0.0
    %800 = vmatpush2.msra.mxu0 0.0
    %801 = vmatprep.subr.mxu0 0.0
    %802 = vmatpush2.msra.mxu0 0.0
    %803 = vmatprep.subr.mxu0 0.0
    %804 = vmatpush2.msra.mxu0 0.0
    %805 = vmatprep.subr.mxu0 0.0
    %806 = vmatpush2.msra.mxu0 0.0
    %807 = vmatprep.subr.mxu0 0.0
    %808 = vmatpush2.msra.mxu0 0.0
    %809 = vmatprep.subr.mxu0 0.0
    %810 = vmatpush2.msra.mxu0 0.0
    %811 = vmatprep.subr.mxu0 0.0
    %812 = vmatpush2.msra.mxu0 0.0
    %813 = vmatprep.subr.mxu0 0.0
    %814 = vmatpush2.msra.mxu0 0.0
    %815 = vmatprep.subr.mxu0 0.0
    %816 = vmatpush2.msra.mxu0 0.0
    %817 = vmatprep.subr.mxu0 0.0
    %818 = vmatpush2.msra.mxu0 0.0
    %819 = vmatprep.subr.mxu0 0.0
    %820 = vmatpush2.msra.mxu0 0.0
    %821 = vmatprep.subr.mxu0 0.0
    %822 = vmatpush2.msra.mxu0 0.0
    %823 = vmatprep.subr.mxu0 0.0
    %824 = vmatpush2.msra.mxu0 0.0
    %825 = vmatprep.subr.mxu0 0.0
    %826 = vmatpush2.msra.mxu0 0.0
    %827 = vmatprep.subr.mxu0 0.0
    %828 = vmatpush2.msra.mxu0 0.0
    %829 = vmatprep.subr.mxu0 0.0
    %830 = vmatpush2.msra.mxu0 0.0
    %831 = vmatprep.mubr.f32.mxu0 0.0
    %832 = vmatmul.mubr.f32.gmra.mxu0 %v765
    %v833 = vpop.f32.mrf.mxu0
    %v834 = vadd.f32 %v481, %v833
    %v835 = vpop.f32.mrf.mxu0
    %836 = vdwg.mxu0
    %v837 = vld [vmem:[%s5] sm:$0xff]
    %v838 = vld [vmem:[%s5 + $0x8] sm:$0xff]
    %v839 = vld [vmem:[%s5 + $0x10] sm:$0xff]
    %v840 = vld [vmem:[%s5 + $0x18] sm:$0xff]
    %v841 = vld [vmem:[%s6] sm:$0x1]
    %v843 = vlaneseq
    %v844 = vshrl.u32 %v843, 7
    %v845 = vsub.s32 0, %v844
    %v846 = vrot.slane %v841, %v845
    %v849 = vsel %vm482, %v761, 0
    %v852 = vsel %vm482, %v834, 0
    %v855 = vsel %vm482, %v837, 0
    %v858 = vsel %vm482, %v838, 0
    %v861 = vsel %vm482, %v839, 0
    %v864 = vsel %vm482, %v840, 0
    %866 = vmatprep.subr.mxu0 0.0
    %867 = vmatpush1.xpose.msra.mxu0 0.0
    %868 = vmatprep.subr.mxu0 0.0
    %869 = vmatpush1.xpose.msra.mxu0 0.0
    %870 = vmatprep.subr.mxu0 0.0
    %871 = vmatpush1.xpose.msra.mxu0 0.0
    %872 = vmatprep.subr.mxu0 0.0
    %873 = vmatpush1.xpose.msra.mxu0 0.0
    %874 = vmatprep.subr.mxu0 0.0
    %875 = vmatpush1.xpose.msra.mxu0 0.0
    %876 = vmatprep.subr.mxu0 0.0
    %877 = vmatpush1.xpose.msra.mxu0 0.0
    %878 = vmatprep.subr.mxu0 0.0
    %879 = vmatpush1.xpose.msra.mxu0 0.0
    %880 = vmatprep.subr.mxu0 0.0
    %881 = vmatpush1.xpose.msra.mxu0 0.0
    %882 = vmatprep.subr.mxu0 0.0
    %883 = vmatpush1.xpose.msra.mxu0 0.0
    %884 = vmatprep.subr.mxu0 0.0
    %885 = vmatpush1.xpose.msra.mxu0 0.0
    %886 = vmatprep.subr.mxu0 0.0
    %887 = vmatpush1.xpose.msra.mxu0 0.0
    %888 = vmatprep.subr.mxu0 0.0
    %889 = vmatpush1.xpose.msra.mxu0 0.0
    %890 = vmatprep.subr.mxu0 0.0
    %891 = vmatpush1.xpose.msra.mxu0 %v864
    %892 = vmatprep.subr.mxu0 0.0
    %893 = vmatpush1.xpose.msra.mxu0 %v861
    %894 = vmatprep.subr.mxu0 0.0
    %895 = vmatpush1.xpose.msra.mxu0 %v858
    %896 = vmatprep.subr.mxu0 0.0
    %897 = vmatpush1.xpose.msra.mxu0 %v855
    %898 = vmatprep.subr.mxu0 0.0
    %899 = vmatpush2.xpose.msra.mxu0 0.0
    %900 = vmatprep.subr.mxu0 0.0
    %901 = vmatpush2.xpose.msra.mxu0 0.0
    %902 = vmatprep.subr.mxu0 0.0
    %903 = vmatpush2.xpose.msra.mxu0 0.0
    %904 = vmatprep.subr.mxu0 0.0
    %905 = vmatpush2.xpose.msra.mxu0 0.0
    %906 = vmatprep.subr.mxu0 0.0
    %907 = vmatpush2.xpose.msra.mxu0 0.0
    %908 = vmatprep.subr.mxu0 0.0
    %909 = vmatpush2.xpose.msra.mxu0 0.0
    %910 = vmatprep.subr.mxu0 0.0
    %911 = vmatpush2.xpose.msra.mxu0 0.0
    %912 = vmatprep.subr.mxu0 0.0
    %913 = vmatpush2.xpose.msra.mxu0 0.0
    %914 = vmatprep.subr.mxu0 0.0
    %915 = vmatpush2.xpose.msra.mxu0 0.0
    %916 = vmatprep.subr.mxu0 0.0
    %917 = vmatpush2.xpose.msra.mxu0 0.0
    %918 = vmatprep.subr.mxu0 0.0
    %919 = vmatpush2.xpose.msra.mxu0 0.0
    %920 = vmatprep.subr.mxu0 0.0
    %921 = vmatpush2.xpose.msra.mxu0 0.0
    %922 = vmatprep.subr.mxu0 0.0
    %923 = vmatpush2.xpose.msra.mxu0 0.0
    %924 = vmatprep.subr.mxu0 0.0
    %925 = vmatpush2.xpose.msra.mxu0 0.0
    %926 = vmatprep.subr.mxu0 0.0
    %927 = vmatpush2.xpose.msra.mxu0 0.0
    %928 = vmatprep.subr.mxu0 0.0
    %929 = vmatpush2.xpose.msra.mxu0 0.0
    %930 = vmatprep.mubr.f32.mxu0 0.0
    %931 = vmatmul.mubr.f32.gmra.mxu0 %v849
    %v932 = vpop.f32.mrf.mxu0
    %v933 = vadd.f32 %v846, %v932
    %v934 = vpop.f32.mrf.mxu0
    %935 = vmatprep.mubr.f32.mxu0 0.0
    %936 = vmatmul.mubr.f32.gmra.mxu0 %v852
    %v937 = vpop.f32.mrf.mxu0
    %v938 = vadd.f32 %v846, %v937
    %v939 = vpop.f32.mrf.mxu0
    %940 = vdwg.mxu0
    %v941 = vsel %vm482, %v933, 0.0
    %942 = vadd.xlane.f32.xlu0 %v941
    %v943 = vpop.xlane.xlu0 %942
    %v944 = vsel %vm482, %v938, 0.0
    %945 = vadd.xlane.f32.xlu0 %v944
    %v946 = vpop.xlane.xlu0 %945
    %v947 = vrcp.pop 32.0
    %v948 = vmul.f32 %v943, %v947
    %v949 = vmul.f32 %v946, %v947
    %v950 = vsub.f32 %v933, %v948
    %v951 = vsub.f32 %v938, %v949
    %v952 = vmul.f32 %v950, %v950
    %v953 = vmul.f32 %v951, %v951
    %v954 = vsel %vm482, %v952, 0.0
    %955 = vadd.xlane.f32.xlu0 %v954
    %v956 = vpop.xlane.xlu0 %955
    %v957 = vsel %vm482, %v953, 0.0
    %958 = vadd.xlane.f32.xlu0 %v957
    %v959 = vpop.xlane.xlu0 %958
    %v960 = vmul.f32 %v956, 0.032258064
    %v961 = vmul.f32 %v959, 0.032258064
    %v962 = vrsqrt.pop %v960
    %v963 = vrsqrt.pop %v961
    %v964 = vmul.f32 %v950, %v962
    %v965 = vmul.f32 %v951, %v963
    %v966 = vadd.f32 %v964, 1e-05
    %v967 = vadd.f32 %v965, 1e-05
    %968 = vst.msk [vmem:[#allocation2] sm:$0xff] %vm482, %v966
    %969 = vst.msk [vmem:[#allocation2 + $0x8] sm:$0xff] %vm482, %v967
    // Predicated region
    $region30: #{tpu_custom_call.1} parent=1 // pred_check
      _
    $region31: #{tpu_custom_call.1} parent=1 // pred_check_branch
      %971 = sbr.rel (0) target = $region33
    $region32: #{tpu_custom_call.1} parent=1 // pred_region
      %s973 = ssub.s32 256, 256
      %974 = vsyncadd [#allocation3], %s973
      %s975 = sshll.u32 [#allocation2], 4
      %s976 = int_to_ptr.vmem [resolvable:$true] %s975
      %981 = dma.vmem_to_hbm [thread:$0]  %s976, 256, %s7, [#allocation3], 128, 128, 8
    $region33: #{tpu_custom_call.1} parent=1 // pred_fallthru
      _
    // Predicated region
    $region34: #{tpu_custom_call.1} parent=1 // pred_check
      _
    $region35: #{tpu_custom_call.1} parent=1 // pred_check_branch
      %983 = sbr.rel (0) target = $region37
    $region36: #{tpu_custom_call.1} parent=1 // pred_region
      %984 = dma.done [#allocation3], 256
    $region37: #{tpu_custom_call.1} parent=1 // pred_fallthru
      _
    %985 = vsyncpa [#allocation3], 1

</llo_original>
